<compile_context>
chip_gen: v7x
topology: tpu7x:2x2x1
jax: 0.10.0
libtpu: 0.0.40
codegen_flags: <defaults>
</compile_context>

<pallas_src>
import functools
import math

import jax
import jax.numpy as jnp
from jax.experimental import pallas as pl
from jax.experimental.pallas import tpu as pltpu

_INV_SQRT2 = 1.0 / math.sqrt(2.0)


def _perceptron_kernel(x_ref, w_ref, o_ref, *, scale, activation, apply_sign):
    # x_ref: (TILE_B, D), w_ref: (1, D) broadcast over sublanes.
    x = x_ref[...].astype(jnp.float32)
    w = w_ref[...].astype(jnp.float32)

    # VPU multiply + XLU row-reduce; both units have slack in this mem-bound
    # kernel, and it avoids the N=1 MXU matmul + w relayout.
    y = jnp.sum(x * w, axis=-1, keepdims=True) * scale   # (TILE_B, 1)

    if activation == 'Linear':
        pass
    elif activation == 'Erf':
        # Matches torch: erf(x / sqrt(2))
        y = jax.lax.erf(y * _INV_SQRT2)
    elif activation == 'ReLU':
        y = jnp.maximum(y, 0.0)
    elif activation == 'Tanh':
        y = jnp.tanh(y)
    else:
        raise ValueError(f"unknown activation: {activation}")

    if apply_sign:
        y = jnp.sign(y)

    o_ref[...] = y.astype(o_ref.dtype)


def _round_up(v, m):
    return ((v + m - 1) // m) * m


def perceptron_forward(x, w, activation='Erf', *, apply_sign=False,
                       max_tile_b=512):
    """Pallas equivalent of PerceptronModel.forward.

    x: (B, D) float32 (bf16 also accepted; upcast in-kernel)
    w: (1, D) float32 (nn.Linear(input_size, 1, bias=False).weight)
    returns: (B, 1) float32
    """
    B, D = x.shape
    assert w.shape == (1, D), f"expected w of shape (1, {D}), got {w.shape}"
    scale = 1.0 / (D ** 0.5)

    # --- batch tile sizing -------------------------------------------------
    # Keep one double-buffered x block well inside scoped VMEM on all of
    # v5e (16 MiB default) / v6e (32 MiB) / v7x (64 MiB physical):
    # 8 MiB per buffer => 16 MiB double-buffered for x, plus tiny w / output.
    bytes_per_row = D * x.dtype.itemsize
    per_buf_budget = 8 * 1024 * 1024
    tile_b = min(max_tile_b, max(8, per_buf_budget // max(bytes_per_row, 1)))
    tile_b = max(8, (tile_b // 8) * 8)              # sublane-aligned
    tile_b = min(tile_b, _round_up(B, 8))           # don't over-pad tiny batches

    # Pad B up to a multiple of tile_b; padded rows are zeros and are sliced
    # off after the kernel (they never affect real outputs).
    padded_B = _round_up(B, tile_b)
    x_in = jnp.pad(x, ((0, padded_B - B), (0, 0))) if padded_B != B else x

    grid = (padded_B // tile_b,)

    kernel = functools.partial(
        _perceptron_kernel, scale=scale, activation=activation,
        apply_sign=apply_sign)

    # Double-buffered x + slack for w / out / scratch.
    vmem_limit = max(int(2 * tile_b * bytes_per_row) + (4 << 20), 16 << 20)

    out = pl.pallas_call(
        kernel,
        out_shape=jax.ShapeDtypeStruct((padded_B, 1), jnp.float32),
        grid=grid,
        in_specs=[
            pl.BlockSpec((tile_b, D), lambda i: (i, 0)),   # x: stream over B
            pl.BlockSpec((1, D), lambda i: (0, 0)),        # w: resident
        ],
        out_specs=pl.BlockSpec((tile_b, 1), lambda i: (i, 0)),
        compiler_params=pltpu.CompilerParams(
            dimension_semantics=("parallel",),
            vmem_limit_bytes=vmem_limit,
        ),
    )(x_in, w)

    return out[:B] if padded_B != B else out


def perceptron_predict(x, w, activation='Erf'):
    """Pallas equivalent of PerceptronModel.predict: sign(forward(x)), fused."""
    return perceptron_forward(x, w, activation, apply_sign=True)


def _reference_forward(x, w, activation):
    y = x @ w.T / (x.shape[1] ** 0.5)
    if activation == 'Erf':
        y = jax.lax.erf(y * _INV_SQRT2)
    elif activation == 'ReLU':
        y = jnp.maximum(y, 0.0)
    elif activation == 'Tanh':
        y = jnp.tanh(y)
    return y


if __name__ == "__main__":
    key = jax.random.PRNGKey(0)
    activation = 'Erf'

    # Small deterministic example matching the module: batch=8, input_size=32.
    kx, kw, kx2 = jax.random.split(key, 3)
    B, D = 8, 32
    x = jax.random.normal(kx, (B, D), dtype=jnp.float32)
    w = jax.random.normal(kw, (1, D), dtype=jnp.float32) / math.sqrt(D)

    out = jax.block_until_ready(perceptron_forward(x, w, activation))
    ref = _reference_forward(x, w, activation)
    assert out.shape == (B, 1)
    assert jnp.allclose(out, ref, atol=1e-5, rtol=1e-5)

    # Fused-sign predict path.
    pred = jax.block_until_ready(perceptron_predict(x, w, activation))
    assert pred.shape == (B, 1)
    assert jnp.allclose(pred, jnp.sign(ref), atol=0, rtol=0)

    # Exercise the tiled/padded grid path (B not a multiple of the tile, odd D
    # handled via full-extent last block dim).
    B2, D2 = 260, 384
    x2 = jax.random.normal(kx2, (B2, D2), dtype=jnp.float32)
    w2 = jax.random.normal(kw, (1, D2), dtype=jnp.float32) / math.sqrt(D2)
    out2 = jax.block_until_ready(
        perceptron_forward(x2, w2, activation, max_tile_b=64))
    ref2 = _reference_forward(x2, w2, activation)
    assert out2.shape == (B2, 1)
    assert jnp.allclose(out2, ref2, atol=1e-5, rtol=1e-5)

    print("KERNEL_OK")
</pallas_src>

<mosaic_0001>
module attributes {stable_mosaic.version = 11 : i64} {
  func.func @_perceptron_kernel(%arg0: i32, %arg1: memref<8x32xf32, #tpu.memory_space<vmem>>, %arg2: memref<1x32xf32, #tpu.memory_space<vmem>>, %arg3: memref<8x1xf32, #tpu.memory_space<vmem>>) attributes {dimension_semantics = [#tpu.dimension_semantics<parallel>], iteration_bounds = array<i64: 1>, scalar_prefetch = 0 : i64, scratch_operands = 0 : i64, tpu.core_type = #tpu.core_type<tc>, window_params = [{transform_indices = @transform_0, window_bounds = array<i64: 8, 32>}, {pipeline_mode = #tpu.pipeline_mode<synchronous>, transform_indices = @transform_1, window_bounds = array<i64: 1, 32>}, {transform_indices = @transform_2, window_bounds = array<i64: 8, 1>}]} {
    %c0 = arith.constant 0 : index
    %c0_0 = arith.constant 0 : index
    %0 = vector.load %arg1[%c0, %c0_0] : memref<8x32xf32, #tpu.memory_space<vmem>>, vector<8x32xf32>
    %c0_1 = arith.constant 0 : index
    %c0_2 = arith.constant 0 : index
    %1 = vector.load %arg2[%c0_1, %c0_2] : memref<1x32xf32, #tpu.memory_space<vmem>>, vector<1x32xf32>
    %2 = vector.broadcast %1 : vector<1x32xf32> to vector<8x32xf32>
    %3 = arith.mulf %0, %2 : vector<8x32xf32>
    %cst = arith.constant dense<0.000000e+00> : vector<8xf32>
    %4 = vector.multi_reduction <add>, %3, %cst [1] : vector<8x32xf32> to vector<8xf32>
    %5 = vector.shape_cast %4 : vector<8xf32> to vector<8x1xf32>
    %cst_3 = arith.constant 0.176776692 : f32
    %6 = vector.broadcast %cst_3 : f32 to vector<8x1xf32>
    %7 = arith.mulf %5, %6 : vector<8x1xf32>
    %cst_4 = arith.constant 0.707106769 : f32
    %8 = vector.broadcast %cst_4 : f32 to vector<8x1xf32>
    %9 = arith.mulf %7, %8 : vector<8x1xf32>
    %10 = math.erf %9 : vector<8x1xf32>
    %c0_5 = arith.constant 0 : index
    %c0_6 = arith.constant 0 : index
    %11 = vector.load %arg3[%c0_5, %c0_6] : memref<8x1xf32, #tpu.memory_space<vmem>>, vector<8x1xf32>
    tpu.vector_store %arg3[%c0_5, %c0_6], %10 {strides = array<i32>} : memref<8x1xf32, #tpu.memory_space<vmem>>, vector<8x1xf32>,
    return
  }
  func.func @transform_0(%arg0: i32) -> (i32, i32) {
    %c0_i32 = arith.constant 0 : i32
    %c0_i32_0 = arith.constant 0 : i32
    return %arg0, %c0_i32 : i32, i32
  }
  func.func @transform_1(%arg0: i32) -> (i32, i32) {
    %c0_i32 = arith.constant 0 : i32
    %c0_i32_0 = arith.constant 0 : i32
    %c0_i32_1 = arith.constant 0 : i32
    return %c0_i32, %c0_i32_0 : i32, i32
  }
  func.func @transform_2(%arg0: i32) -> (i32, i32) {
    %c0_i32 = arith.constant 0 : i32
    %c0_i32_0 = arith.constant 0 : i32
    return %arg0, %c0_i32 : i32, i32
  }
}

</mosaic_0001>

<llo_original>
// kernel: tpu_custom_call.1
$region0: #{tpu_custom_call.1}
  #allocation0 [shape = 'u32[]', space=smem, size = 0x4, offset = 0x4, fixed_abs, tag = 'smem constant byte address 0x4 - core index']
  #allocation1 [shape = 'u32[144,128]{1,0:T(1,128)}', space=vmem, size = 0x12000, scoped, tag = 'internal scratch']
  %s0 = inlined_call_operand.hbm [shape: f32[8,32], index: 0, kind: input, shape index: {}]
  %s1 = inlined_call_operand.vmem [shape: f32[1,32], index: 1, kind: input, shape index: {}]
  %s2 = inlined_call_operand.vmem [shape: f32[8,1], index: 2, kind: output, shape index: {}]
  %s3 = sld [smem:[#allocation0]]
  $region22: #{tpu_custom_call.1} parent=0
    _
  %s5 = ssub.s32 1, %s3
  %s6 = scalar_select 0, %s5, %s3
  $region1: #{tpu_custom_call.1} parent=0
    #allocation2 [shape = 'u8[4096]{0}', space=vmem, size = 0x1000, scoped, tag = 'input window, operand 0, single buffered']
    #allocation3 [shape = 's32[1]{0}', space=sflag, size = 0x4, scoped, tag = 'scoped memory for tpu_custom_call.1']
    %7 = vsyncpa [#allocation3], 0
    // Predicated region
    $region2: #{tpu_custom_call.1} parent=1 // pred_check
      _
    $region3: #{tpu_custom_call.1} parent=1 // pred_check_branch
      %9 = sbr.rel (0) target = $region5
    $region4: #{tpu_custom_call.1} parent=1 // pred_region
      %s11 = ssub.s32 128, 128
      %12 = vsyncadd [#allocation3], %s11
      %s14 = sshll.u32 [#allocation2], 4
      %s15 = int_to_ptr.vmem [resolvable:$true] %s14
      %17 = dma.hbm_to_vmem [thread:$0]  %s0, 128, %s15, [#allocation3]
    $region5: #{tpu_custom_call.1} parent=1 // pred_fallthru
      _
    // Predicated region
    $region6: #{tpu_custom_call.1} parent=1 // pred_check
      _
    $region7: #{tpu_custom_call.1} parent=1 // pred_check_branch
      %19 = sbr.rel (0) target = $region9
    $region8: #{tpu_custom_call.1} parent=1 // pred_region
      _
    $region9: #{tpu_custom_call.1} parent=1 // pred_fallthru
      _
    // Predicated region
    $region10: #{tpu_custom_call.1} parent=1 // pred_check
      _
    $region11: #{tpu_custom_call.1} parent=1 // pred_check_branch
      %21 = sbr.rel (0) target = $region13
    $region12: #{tpu_custom_call.1} parent=1 // pred_region
      %22 = dma.done [#allocation3], 128
    $region13: #{tpu_custom_call.1} parent=1 // pred_fallthru
      _
    %v23 = vld [vmem:[#allocation2] sm:$0xff]
    %v24 = vld [vmem:[%s1] sm:$0x1]
    %v26 = vlaneseq
    %v27 = vshrl.u32 %v26, 7
    %v28 = vsub.s32 0, %v27
    %v29 = vrot.slane %v24, %v28
    %v31 = vmul.f32 %v23, %v29
    %vm32 = vcmask 261120
    %v33 = vsel %vm32, %v31, 0.0
    %34 = vadd.xlane.f32.xlu0 %v33
    %v35 = vpop.xlane.xlu0 %34
    %v36 = vmul.f32 %v35, 0.17677669
    %v37 = vmul.f32 %v36, 0.70710677
    %v38 = verf.f32.pop %v37
    %vm39 = vcmask 7168
    %40 = vst.msk [vmem:[%s2] sm:$0xff] %vm39, %v38
    // Predicated region
    $region14: #{tpu_custom_call.1} parent=1 // pred_check
      _
    $region15: #{tpu_custom_call.1} parent=1 // pred_check_branch
      %42 = sbr.rel (0) target = $region17
    $region16: #{tpu_custom_call.1} parent=1 // pred_region
      _
    $region17: #{tpu_custom_call.1} parent=1 // pred_fallthru
      _
    // Predicated region
    $region18: #{tpu_custom_call.1} parent=1 // pred_check
      _
    $region19: #{tpu_custom_call.1} parent=1 // pred_check_branch
      %44 = sbr.rel (0) target = $region21
    $region20: #{tpu_custom_call.1} parent=1 // pred_region
      _
    $region21: #{tpu_custom_call.1} parent=1 // pred_fallthru
      _
    %45 = vsyncpa [#allocation3], 1

</llo_original>
